<compile_context>
chip_gen: v7x
topology: tpu7x:2x2x1
jax: 0.10.0
libtpu: 0.0.40
codegen_flags: <defaults>
</compile_context>

<pallas_src>
import functools

import jax
import jax.numpy as jnp
from jax.experimental import pallas as pl
from jax.experimental.pallas import tpu as pltpu


def _round_up(x, m):
    return ((x + m - 1) // m) * m


def _choose_tile_h(h_out, halo, w_in_lane, w_out_lane, itemsize,
                   budget_bytes=12 * 1024 * 1024, cap_rows=512):
    """Largest output-row tile (multiple of `halo`) whose working set fits the budget."""
    t = min(_round_up(h_out, halo), _round_up(cap_rows, halo))
    while t > halo:
        need = (
            itemsize * 2 * (t + halo) * w_in_lane      # double-buffered input + halo blocks
            + itemsize * (t + halo) * w_in_lane        # halo-assembly scratch
            + 4 * 2 * t * w_out_lane                   # double-buffered f32 output block
        )
        if need <= budget_bytes:
            break
        t -= halo
    return max(t, halo)


def _corr2d_valid_kernel(x_ref, xh_ref, f_ref, o_ref, xext_ref, *,
                         kh, kw, tile_h, halo, w_out_lane):
    """One output-row tile of valid-mode 2D cross-correlation.

    x_ref:    (tile_h, w_in_lane)  current input-row block (VMEM)
    xh_ref:   (halo,   w_in_lane)  next rows (halo) block (VMEM)
    f_ref:    (kh, kw)             filter taps (SMEM, scalar reads)
    o_ref:    (tile_h, w_out_lane) output tile (VMEM, lane-dense)
    xext_ref: (tile_h+halo, w_in_lane) scratch holding the halo-extended tile
    """
    # Assemble the halo-extended tile once; all tap reads below are ref-level
    # window loads from this scratch (aligned writes: tile_h is a multiple of 8).
    xext_ref[pl.ds(0, tile_h), :] = x_ref[...]
    xext_ref[pl.ds(tile_h, halo), :] = xh_ref[...]

    # Hoist the kh*kw scalar SMEM tap reads out of the accumulate loop.
    taps = [[f_ref[a, b] for b in range(kw)] for a in range(kh)]

    acc = jnp.zeros((tile_h, w_out_lane), jnp.float32)
    for a in range(kh):            # static (unrolled) loop over filter rows
        for b in range(kw):        # static (unrolled) loop over filter cols
            win = xext_ref[pl.ds(a, tile_h), pl.ds(b, w_out_lane)]
            acc = acc + win.astype(jnp.float32) * taps[a][b]
    o_ref[...] = acc


def scipy_conv2d(x, filt, *, tile_h=None):
    """Pallas equivalent of ScipyConv2d.forward: correlate2d(x, filt, mode='valid')."""
    H, W = x.shape
    kh, kw = filt.shape
    h_out, w_out = H - kh + 1, W - kw + 1
    assert h_out >= 1 and w_out >= 1, "filter larger than input"

    # Halo rows rounded up to a sublane multiple (>= 8 so the halo block is legal).
    halo = 8 * -(-max(kh - 1, 1) // 8)

    # Lane-dense output width; input width padded so every tap window is in bounds.
    w_out_lane = _round_up(w_out, 128)
    w_in_lane = max(_round_up(w_out_lane + kw - 1, 128), _round_up(W, 128))

    itemsize = jnp.dtype(x.dtype).itemsize
    if tile_h is None:
        tile_h = _choose_tile_h(h_out, halo, w_in_lane, w_out_lane, itemsize)
    tile_h = _round_up(tile_h, halo)
    tile_h = min(tile_h, _round_up(h_out, halo))

    num_tiles = -(-h_out // tile_h)
    h_out_pad = num_tiles * tile_h
    h_in_pad = h_out_pad + halo          # >= H because halo >= kh - 1

    # Zero-padded input slab: rows/cols beyond (H, W) only feed discarded outputs.
    x_pad = jnp.zeros((h_in_pad, w_in_lane), x.dtype).at[:H, :W].set(x)

    kernel = functools.partial(
        _corr2d_valid_kernel,
        kh=kh, kw=kw, tile_h=tile_h, halo=halo, w_out_lane=w_out_lane,
    )

    halo_blocks_per_tile = tile_h // halo

    out_pad = pl.pallas_call(
        kernel,
        out_shape=jax.ShapeDtypeStruct((h_out_pad, w_out_lane), jnp.float32),
        grid_spec=pltpu.PrefetchScalarGridSpec(
            num_scalar_prefetch=0,
            grid=(num_tiles,),
            in_specs=[
                # Current tile's rows (block rows = tile_h, multiple of 8; lanes mult. of 128).
                pl.BlockSpec((tile_h, w_in_lane), lambda i: (i, 0)),
                # Halo: the first `halo` rows of the *next* tile (same array, 2nd operand).
                pl.BlockSpec((halo, w_in_lane),
                             lambda i: ((i + 1) * halo_blocks_per_tile, 0)),
                # Small filter -> SMEM for cheap scalar tap reads.
                pl.BlockSpec(memory_space=pltpu.MemorySpace.SMEM),
            ],
            out_specs=pl.BlockSpec((tile_h, w_out_lane), lambda i: (i, 0)),
            scratch_shapes=[pltpu.VMEM((tile_h + halo, w_in_lane), x.dtype)],
        ),
        compiler_params=pltpu.CompilerParams(
            dimension_semantics=("parallel",),       # megacore split on v7x
            vmem_limit_bytes=32 * 1024 * 1024,       # safe on v7x (64 MiB physical)
        ),
        cost_estimate=pl.CostEstimate(
            flops=2 * kh * kw * h_out * w_out,
            transcendentals=0,
            bytes_accessed=itemsize * H * W + 4 * h_out * w_out + 4 * kh * kw,
        ),
    )(x_pad, x_pad, filt)

    return out_pad[:h_out, :w_out]


def _reference_corr2d_valid(x, filt):
    """Plain-JAX reference (same math, outside Pallas)."""
    H, W = x.shape
    kh, kw = filt.shape
    h_out, w_out = H - kh + 1, W - kw + 1
    acc = jnp.zeros((h_out, w_out), jnp.float32)
    for a in range(kh):
        for b in range(kw):
            acc = acc + x[a:a + h_out, b:b + w_out].astype(jnp.float32) * filt[a, b]
    return acc


if __name__ == "__main__":
    key = jax.random.PRNGKey(0)
    k_in, k_filt, k_in2 = jax.random.split(key, 3)

    kh, kw = 3, 3
    filt = jax.random.normal(k_filt, (kh, kw), dtype=jnp.float32)

    # Case 1: tutorial-like small image (single tile path).
    H, W = 16, 16
    x = jax.random.normal(k_in, (H, W), dtype=jnp.float32)
    out = jax.block_until_ready(scipy_conv2d(x, filt))
    ref = _reference_corr2d_valid(x, filt)
    assert out.shape == (H - kh + 1, W - kw + 1)
    assert jnp.allclose(out, ref, atol=1e-5, rtol=1e-5)

    # Case 2: forces multiple row tiles + halo path (tile_h=16 over 38 output rows).
    H2, W2 = 40, 200
    x2 = jax.random.normal(k_in2, (H2, W2), dtype=jnp.float32)
    out2 = jax.block_until_ready(scipy_conv2d(x2, filt, tile_h=16))
    ref2 = _reference_corr2d_valid(x2, filt)
    assert out2.shape == (H2 - kh + 1, W2 - kw + 1)
    assert jnp.allclose(out2, ref2, atol=1e-5, rtol=1e-5)

    print("KERNEL_OK")
</pallas_src>

<mosaic_0001>
module attributes {stable_mosaic.version = 11 : i64} {
  func.func @_corr2d_valid_kernel(%arg0: i32, %arg1: memref<16x256xf32, #tpu.memory_space<vmem>>, %arg2: memref<8x256xf32, #tpu.memory_space<vmem>>, %arg3: memref<3x3xf32, #tpu.memory_space<smem>>, %arg4: memref<16x128xf32, #tpu.memory_space<vmem>>, %arg5: memref<24x256xf32, #tpu.memory_space<vmem>>) attributes {dimension_semantics = [#tpu.dimension_semantics<parallel>], iteration_bounds = array<i64: 1>, scalar_prefetch = 0 : i64, scratch_operands = 1 : i64, tpu.core_type = #tpu.core_type<tc>, window_params = [{transform_indices = @transform_0, window_bounds = array<i64: 16, 256>}, {transform_indices = @transform_1, window_bounds = array<i64: 8, 256>}, {transform_indices = @transform_2, window_bounds = array<i64: 3, 3>}, {transform_indices = @transform_3, window_bounds = array<i64: 16, 128>}]} {
    %c0 = arith.constant 0 : index
    %c0_0 = arith.constant 0 : index
    %0 = vector.load %arg1[%c0, %c0_0] : memref<16x256xf32, #tpu.memory_space<vmem>>, vector<16x256xf32>
    %c0_1 = arith.constant 0 : index
    %c0_2 = arith.constant 0 : index
    %1 = vector.load %arg5[%c0_1, %c0_2] : memref<24x256xf32, #tpu.memory_space<vmem>>, vector<16x256xf32>
    tpu.vector_store %arg5[%c0_1, %c0_2], %0 {strides = array<i32>} : memref<24x256xf32, #tpu.memory_space<vmem>>, vector<16x256xf32>,
    %c0_3 = arith.constant 0 : index
    %c0_4 = arith.constant 0 : index
    %2 = vector.load %arg2[%c0_3, %c0_4] : memref<8x256xf32, #tpu.memory_space<vmem>>, vector<8x256xf32>
    %c16 = arith.constant 16 : index
    %c0_5 = arith.constant 0 : index
    %3 = vector.load %arg5[%c16, %c0_5] : memref<24x256xf32, #tpu.memory_space<vmem>>, vector<8x256xf32>
    tpu.vector_store %arg5[%c16, %c0_5], %2 {strides = array<i32>} : memref<24x256xf32, #tpu.memory_space<vmem>>, vector<8x256xf32>,
    %c0_6 = arith.constant 0 : index
    %c0_7 = arith.constant 0 : index
    %4 = memref.load %arg3[%c0_6, %c0_7] : memref<3x3xf32, #tpu.memory_space<smem>>
    %c0_8 = arith.constant 0 : index
    %c1 = arith.constant 1 : index
    %5 = memref.load %arg3[%c0_8, %c1] : memref<3x3xf32, #tpu.memory_space<smem>>
    %c0_9 = arith.constant 0 : index
    %c2 = arith.constant 2 : index
    %6 = memref.load %arg3[%c0_9, %c2] : memref<3x3xf32, #tpu.memory_space<smem>>
    %c1_10 = arith.constant 1 : index
    %c0_11 = arith.constant 0 : index
    %7 = memref.load %arg3[%c1_10, %c0_11] : memref<3x3xf32, #tpu.memory_space<smem>>
    %c1_12 = arith.constant 1 : index
    %c1_13 = arith.constant 1 : index
    %8 = memref.load %arg3[%c1_12, %c1_13] : memref<3x3xf32, #tpu.memory_space<smem>>
    %c1_14 = arith.constant 1 : index
    %c2_15 = arith.constant 2 : index
    %9 = memref.load %arg3[%c1_14, %c2_15] : memref<3x3xf32, #tpu.memory_space<smem>>
    %c2_16 = arith.constant 2 : index
    %c0_17 = arith.constant 0 : index
    %10 = memref.load %arg3[%c2_16, %c0_17] : memref<3x3xf32, #tpu.memory_space<smem>>
    %c2_18 = arith.constant 2 : index
    %c1_19 = arith.constant 1 : index
    %11 = memref.load %arg3[%c2_18, %c1_19] : memref<3x3xf32, #tpu.memory_space<smem>>
    %c2_20 = arith.constant 2 : index
    %c2_21 = arith.constant 2 : index
    %12 = memref.load %arg3[%c2_20, %c2_21] : memref<3x3xf32, #tpu.memory_space<smem>>
    %cst = arith.constant 0.000000e+00 : f32
    %13 = vector.broadcast %cst : f32 to vector<16x128xf32>
    %c0_22 = arith.constant 0 : index
    %c0_23 = arith.constant 0 : index
    %14 = vector.load %arg5[%c0_22, %c0_23] : memref<24x256xf32, #tpu.memory_space<vmem>>, vector<16x128xf32>
    %15 = vector.broadcast %4 : f32 to vector<16x128xf32>
    %16 = arith.mulf %14, %15 : vector<16x128xf32>
    %17 = arith.addf %13, %16 : vector<16x128xf32>
    %c0_24 = arith.constant 0 : index
    %c1_25 = arith.constant 1 : index
    %18 = vector.load %arg5[%c0_24, %c1_25] : memref<24x256xf32, #tpu.memory_space<vmem>>, vector<16x128xf32>
    %19 = vector.broadcast %5 : f32 to vector<16x128xf32>
    %20 = arith.mulf %18, %19 : vector<16x128xf32>
    %21 = arith.addf %17, %20 : vector<16x128xf32>
    %c0_26 = arith.constant 0 : index
    %c2_27 = arith.constant 2 : index
    %22 = vector.load %arg5[%c0_26, %c2_27] : memref<24x256xf32, #tpu.memory_space<vmem>>, vector<16x128xf32>
    %23 = vector.broadcast %6 : f32 to vector<16x128xf32>
    %24 = arith.mulf %22, %23 : vector<16x128xf32>
    %25 = arith.addf %21, %24 : vector<16x128xf32>
    %c1_28 = arith.constant 1 : index
    %c0_29 = arith.constant 0 : index
    %26 = vector.load %arg5[%c1_28, %c0_29] : memref<24x256xf32, #tpu.memory_space<vmem>>, vector<16x128xf32>
    %27 = vector.broadcast %7 : f32 to vector<16x128xf32>
    %28 = arith.mulf %26, %27 : vector<16x128xf32>
    %29 = arith.addf %25, %28 : vector<16x128xf32>
    %c1_30 = arith.constant 1 : index
    %c1_31 = arith.constant 1 : index
    %30 = vector.load %arg5[%c1_30, %c1_31] : memref<24x256xf32, #tpu.memory_space<vmem>>, vector<16x128xf32>
    %31 = vector.broadcast %8 : f32 to vector<16x128xf32>
    %32 = arith.mulf %30, %31 : vector<16x128xf32>
    %33 = arith.addf %29, %32 : vector<16x128xf32>
    %c1_32 = arith.constant 1 : index
    %c2_33 = arith.constant 2 : index
    %34 = vector.load %arg5[%c1_32, %c2_33] : memref<24x256xf32, #tpu.memory_space<vmem>>, vector<16x128xf32>
    %35 = vector.broadcast %9 : f32 to vector<16x128xf32>
    %36 = arith.mulf %34, %35 : vector<16x128xf32>
    %37 = arith.addf %33, %36 : vector<16x128xf32>
    %c2_34 = arith.constant 2 : index
    %c0_35 = arith.constant 0 : index
    %38 = vector.load %arg5[%c2_34, %c0_35] : memref<24x256xf32, #tpu.memory_space<vmem>>, vector<16x128xf32>
    %39 = vector.broadcast %10 : f32 to vector<16x128xf32>
    %40 = arith.mulf %38, %39 : vector<16x128xf32>
    %41 = arith.addf %37, %40 : vector<16x128xf32>
    %c2_36 = arith.constant 2 : index
    %c1_37 = arith.constant 1 : index
    %42 = vector.load %arg5[%c2_36, %c1_37] : memref<24x256xf32, #tpu.memory_space<vmem>>, vector<16x128xf32>
    %43 = vector.broadcast %11 : f32 to vector<16x128xf32>
    %44 = arith.mulf %42, %43 : vector<16x128xf32>
    %45 = arith.addf %41, %44 : vector<16x128xf32>
    %c2_38 = arith.constant 2 : index
    %c2_39 = arith.constant 2 : index
    %46 = vector.load %arg5[%c2_38, %c2_39] : memref<24x256xf32, #tpu.memory_space<vmem>>, vector<16x128xf32>
    %47 = vector.broadcast %12 : f32 to vector<16x128xf32>
    %48 = arith.mulf %46, %47 : vector<16x128xf32>
    %49 = arith.addf %45, %48 : vector<16x128xf32>
    %c0_40 = arith.constant 0 : index
    %c0_41 = arith.constant 0 : index
    %50 = vector.load %arg4[%c0_40, %c0_41] : memref<16x128xf32, #tpu.memory_space<vmem>>, vector<16x128xf32>
    tpu.vector_store %arg4[%c0_40, %c0_41], %49 {strides = array<i32>} : memref<16x128xf32, #tpu.memory_space<vmem>>, vector<16x128xf32>,
    return
  }
  func.func @transform_0(%arg0: i32) -> (i32, i32) {
    %c0_i32 = arith.constant 0 : i32
    %c0_i32_0 = arith.constant 0 : i32
    return %arg0, %c0_i32 : i32, i32
  }
  func.func @transform_1(%arg0: i32) -> (i32, i32) {
    %c1_i32 = arith.constant 1 : i32
    %0 = arith.addi %arg0, %c1_i32 : i32
    %c2_i32 = arith.constant 2 : i32
    %1 = arith.muli %0, %c2_i32 : i32
    %c0_i32 = arith.constant 0 : i32
    %c0_i32_0 = arith.constant 0 : i32
    return %1, %c0_i32 : i32, i32
  }
  func.func @transform_2(%arg0: i32) -> (i32, i32) {
    %c0_i32 = arith.constant 0 : i32
    %c0_i32_0 = arith.constant 0 : i32
    %c0_i32_1 = arith.constant 0 : i32
    return %c0_i32, %c0_i32_0 : i32, i32
  }
  func.func @transform_3(%arg0: i32) -> (i32, i32) {
    %c0_i32 = arith.constant 0 : i32
    %c0_i32_0 = arith.constant 0 : i32
    return %arg0, %c0_i32 : i32, i32
  }
}

</mosaic_0001>

<llo_original>
// kernel: tpu_custom_call.1
$region0: #{tpu_custom_call.1}
  #allocation0 [shape = 'u32[]', space=smem, size = 0x4, offset = 0x4, fixed_abs, tag = 'smem constant byte address 0x4 - core index']
  #allocation1 [shape = 'u32[144,128]{1,0:T(1,128)}', space=vmem, size = 0x12000, scoped, tag = 'internal scratch']
  #allocation2 [shape = 'f32[24,256]{1,0:T(8,128)}', space=vmem, size = 0x6000, scoped, tag = 'scratch operand']
  %s0 = inlined_call_operand.hbm [shape: f32[24,256], index: 0, kind: input, shape index: {}]
  %s1 = inlined_call_operand.hbm [shape: f32[24,256], index: 1, kind: input, shape index: {}]
  %s2 = inlined_call_operand.vmem [shape: f32[3,3], index: 2, kind: input, shape index: {}]
  %s3 = inlined_call_operand.hbm [shape: f32[16,128], index: 3, kind: output, shape index: {}]
  %s4 = sld [smem:[#allocation0]]
  $region34: #{tpu_custom_call.1} parent=0
    _
  %s6 = ssub.s32 1, %s4
  %s7 = scalar_select 0, %s6, %s4
  $region1: #{tpu_custom_call.1} parent=0
    #allocation3 [shape = 'u8[16384]{0}', space=vmem, size = 0x4000, scoped, tag = 'input window, operand 0, single buffered']
    #allocation4 [shape = 's32[1]{0}', space=sflag, size = 0x4, scoped, tag = 'scoped memory for tpu_custom_call.1']
    #allocation5 [shape = 's32[1]{0}', space=sflag, size = 0x4, scoped, tag = 'scoped memory for tpu_custom_call.1']
    #allocation6 [shape = 's32[1]{0}', space=sflag, size = 0x4, scoped, tag = 'scoped memory for tpu_custom_call.1']
    #allocation7 [shape = 'u8[8192]{0}', space=vmem, size = 0x2000, scoped, tag = 'input window, operand 1, single buffered']
    #allocation8 [shape = 's32[1]{0}', space=sflag, size = 0x4, scoped, tag = 'scoped memory for tpu_custom_call.1']
    #allocation9 [shape = 'u8[2048]{0}', space=smem, size = 0x800, scoped, tag = 'input window, operand 2, single buffered']
    #allocation10 [shape = 'u8[8192]{0}', space=vmem, size = 0x2000, scoped, tag = 'output window, operand 0, single buffered']
    %8 = vsyncpa [#allocation4], 0
    %9 = vsyncpa [#allocation8], 0
    %10 = vsyncpa [#allocation6], 0
    %11 = vsyncpa [#allocation5], 0
    // Predicated region
    $region2: #{tpu_custom_call.1} parent=1 // pred_check
      _
    $region3: #{tpu_custom_call.1} parent=1 // pred_check_branch
      %13 = sbr.rel (0) target = $region5
    $region4: #{tpu_custom_call.1} parent=1 // pred_region
      %s15 = ssub.s32 512, 512
      %16 = vsyncadd [#allocation4], %s15
      %s17 = sshll.u32 [#allocation3], 4
      %s18 = int_to_ptr.vmem [resolvable:$true] %s17
      %23 = dma.hbm_to_vmem [thread:$0]  %s0, 512, %s18, [#allocation4], 256, 256, 16
    $region5: #{tpu_custom_call.1} parent=1 // pred_fallthru
      _
    // Predicated region
    $region6: #{tpu_custom_call.1} parent=1 // pred_check
      _
    $region7: #{tpu_custom_call.1} parent=1 // pred_check_branch
      %25 = sbr.rel (0) target = $region9
    $region8: #{tpu_custom_call.1} parent=1 // pred_region
      %s26 = sadd.s32 0, 1
      %s27 = smul.u32 %s26, 2
      %s29 = ssub.s32 256, 256
      %30 = vsyncadd [#allocation8], %s29
      %s31 = smul.addr %s27, 2
      %s32 = smul.addr %s31, 128
      %s33 = scalar_lea.hbm %s1, %s32
      %s35 = sshll.u32 [#allocation7], 4
      %s36 = int_to_ptr.vmem [resolvable:$true] %s35
      %38 = dma.hbm_to_vmem [thread:$0]  %s33, 256, %s36, [#allocation8]
    $region9: #{tpu_custom_call.1} parent=1 // pred_fallthru
      _
    // Predicated region
    $region10: #{tpu_custom_call.1} parent=1 // pred_check
      _
    $region11: #{tpu_custom_call.1} parent=1 // pred_check_branch
      %40 = sbr.rel (0) target = $region13
    $region12: #{tpu_custom_call.1} parent=1 // pred_region
      %s42 = ssub.s32 64, 64
      %43 = vsyncadd [#allocation6], %s42
      %s45 = sshll.u32 %s2, 4
      %s46 = int_to_ptr.vmem [resolvable:$true] %s45
      %48 = dma.vmem_to_smem %s46, 64, [#allocation9], [#allocation6]
    $region13: #{tpu_custom_call.1} parent=1 // pred_fallthru
      _
    // Predicated region
    $region14: #{tpu_custom_call.1} parent=1 // pred_check
      _
    $region15: #{tpu_custom_call.1} parent=1 // pred_check_branch
      %50 = sbr.rel (0) target = $region17
    $region16: #{tpu_custom_call.1} parent=1 // pred_region
      %51 = dma.done [#allocation4], 512
    $region17: #{tpu_custom_call.1} parent=1 // pred_fallthru
      _
    // Predicated region
    $region18: #{tpu_custom_call.1} parent=1 // pred_check
      _
    $region19: #{tpu_custom_call.1} parent=1 // pred_check_branch
      %53 = sbr.rel (0) target = $region21
    $region20: #{tpu_custom_call.1} parent=1 // pred_region
      %54 = dma.done [#allocation8], 256
    $region21: #{tpu_custom_call.1} parent=1 // pred_fallthru
      _
    // Predicated region
    $region22: #{tpu_custom_call.1} parent=1 // pred_check
      _
    $region23: #{tpu_custom_call.1} parent=1 // pred_check_branch
      %56 = sbr.rel (0) target = $region25
    $region24: #{tpu_custom_call.1} parent=1 // pred_region
      %57 = dma.done [#allocation6], 64
    $region25: #{tpu_custom_call.1} parent=1 // pred_fallthru
      _
    %58 = sfence
    %s59 = sadd.s32 0, 1
    %s60 = smul.u32 %s59, 2
    %v61 = vld [vmem:[#allocation3] sm:$0xff]
    %v62 = vld [vmem:[#allocation3 + $0x8] sm:$0xff]
    %v63 = vld [vmem:[#allocation3 + $0x10] sm:$0xff]
    %v64 = vld [vmem:[#allocation3 + $0x18] sm:$0xff]
    %65 = vst [vmem:[#allocation2] sm:$0xff] %v61
    %66 = vst [vmem:[#allocation2 + $0x8] sm:$0xff] %v62
    %67 = vst [vmem:[#allocation2 + $0x10] sm:$0xff] %v63
    %68 = vst [vmem:[#allocation2 + $0x18] sm:$0xff] %v64
    %v69 = vld [vmem:[#allocation7] sm:$0xff]
    %v70 = vld [vmem:[#allocation7 + $0x8] sm:$0xff]
    %71 = vst [vmem:[#allocation2 + $0x20] sm:$0xff] %v69
    %72 = vst [vmem:[#allocation2 + $0x28] sm:$0xff] %v70
    %s73 = sld [smem:[#allocation9]]
    %s74 = sld [smem:[#allocation9 + $0x1]]
    %s75 = sld [smem:[#allocation9 + $0x2]]
    %s76 = sld [smem:[#allocation9 + $0x80]]
    %s77 = sld [smem:[#allocation9 + $0x81]]
    %s78 = sld [smem:[#allocation9 + $0x82]]
    %s79 = sld [smem:[#allocation9 + $0x100]]
    %s80 = sld [smem:[#allocation9 + $0x101]]
    %s81 = sld [smem:[#allocation9 + $0x102]]
    %v82 = vld [vmem:[#allocation2] sm:$0xff]
    %v83 = vld [vmem:[#allocation2 + $0x10] sm:$0xff]
    %v84 = vstv %s73
    %v85 = vmul.f32 %v82, %v84
    %v86 = vmul.f32 %v83, %v84
    %v87 = vadd.f32 %v85, 0.0
    %v88 = vadd.f32 %v86, 0.0
    %v89 = vld [vmem:[#allocation2 + $0x8] sm:$0xff]
    %v90 = vld [vmem:[#allocation2 + $0x18] sm:$0xff]
    %v91 = vstv %s74
    %v92 = vmul.f32 %v82, %v91
    %v93 = vmul.f32 %v89, %v91
    %v94 = vmul.f32 %v83, %v91
    %v95 = vmul.f32 %v90, %v91
    %100 = vrot.lane.b32.xlu0 %v92, 127
    %v101 = vpop.permute.xlu0 %100
    %102 = vrot.lane.b32.xlu0 %v93, 127
    %v103 = vpop.permute.xlu0 %102
    %104 = vrot.lane.b32.xlu0 %v94, 127
    %v105 = vpop.permute.xlu0 %104
    %106 = vrot.lane.b32.xlu0 %v95, 127
    %v107 = vpop.permute.xlu0 %106
    %vm108 = vcmask 1039360
    %v109 = vsel %vm108, %v101, %v103
    %v110 = vsel %vm108, %v105, %v107
    %v113 = vadd.f32 %v87, %v109
    %v114 = vadd.f32 %v88, %v110
    %v115 = vstv %s75
    %v116 = vmul.f32 %v82, %v115
    %v117 = vmul.f32 %v89, %v115
    %v118 = vmul.f32 %v83, %v115
    %v119 = vmul.f32 %v90, %v115
    %124 = vrot.lane.b32.xlu0 %v116, 126
    %v125 = vpop.permute.xlu0 %124
    %126 = vrot.lane.b32.xlu0 %v117, 126
    %v127 = vpop.permute.xlu0 %126
    %128 = vrot.lane.b32.xlu0 %v118, 126
    %v129 = vpop.permute.xlu0 %128
    %130 = vrot.lane.b32.xlu0 %v119, 126
    %v131 = vpop.permute.xlu0 %130
    %vm132 = vcmask 1031168
    %v133 = vsel %vm132, %v125, %v127
    %v134 = vsel %vm132, %v129, %v131
    %v137 = vadd.f32 %v113, %v133
    %v138 = vadd.f32 %v114, %v134
    %v139 = vld [vmem:[#allocation2] sm:$0xfe]
    %v140 = vld [vmem:[#allocation2 + $0x20] sm:$0x1]
    %v141 = vstv %s76
    %v142 = vmul.f32 %v139, %v141
    %v143 = vmul.f32 %v83, %v141
    %v144 = vmul.f32 %v140, %v141
    %vm148 = vcmask 1046528
    %v149 = vrot.slane %v142, 1
    %v150 = vrot.slane %v143, 1
    %v151 = vsel %vm148, %v149, %v150
    %v152 = vrot.slane %v144, 1
    %v153 = vsel %vm148, %v150, %v152
    %v156 = vadd.f32 %v137, %v151
    %v157 = vadd.f32 %v138, %v153
    %v158 = vld [vmem:[#allocation2] sm:$0xfe]
    %v159 = vld [vmem:[#allocation2 + $0x8] sm:$0xfe]
    %v160 = vld [vmem:[#allocation2 + $0x10] sm:$0xff]
    %v161 = vld [vmem:[#allocation2 + $0x18] sm:$0xff]
    %v162 = vld [vmem:[#allocation2 + $0x20] sm:$0x1]
    %v163 = vld [vmem:[#allocation2 + $0x28] sm:$0x1]
    %v164 = vstv %s77
    %v165 = vmul.f32 %v158, %v164
    %v166 = vmul.f32 %v159, %v164
    %v167 = vmul.f32 %v160, %v164
    %v168 = vmul.f32 %v161, %v164
    %v169 = vmul.f32 %v162, %v164
    %v170 = vmul.f32 %v163, %v164
    %v177 = vrot.slane %v165, 1
    %v178 = vrot.slane %v167, 1
    %v179 = vsel %vm148, %v177, %v178
    %v180 = vrot.slane %v166, 1
    %v181 = vrot.slane %v168, 1
    %v182 = vsel %vm148, %v180, %v181
    %v183 = vrot.slane %v169, 1
    %v184 = vsel %vm148, %v178, %v183
    %v185 = vrot.slane %v170, 1
    %v186 = vsel %vm148, %v181, %v185
    %187 = vrot.lane.b32.xlu0 %v179, 127
    %v188 = vpop.permute.xlu0 %187
    %189 = vrot.lane.b32.xlu0 %v182, 127
    %v190 = vpop.permute.xlu0 %189
    %191 = vrot.lane.b32.xlu0 %v184, 127
    %v192 = vpop.permute.xlu0 %191
    %193 = vrot.lane.b32.xlu0 %v186, 127
    %v194 = vpop.permute.xlu0 %193
    %v195 = vsel %vm108, %v188, %v190
    %v196 = vsel %vm108, %v192, %v194
    %v199 = vadd.f32 %v156, %v195
    %v200 = vadd.f32 %v157, %v196
    %v201 = vstv %s78
    %v202 = vmul.f32 %v158, %v201
    %v203 = vmul.f32 %v159, %v201
    %v204 = vmul.f32 %v160, %v201
    %v205 = vmul.f32 %v161, %v201
    %v206 = vmul.f32 %v162, %v201
    %v207 = vmul.f32 %v163, %v201
    %v214 = vrot.slane %v202, 1
    %v215 = vrot.slane %v204, 1
    %v216 = vsel %vm148, %v214, %v215
    %v217 = vrot.slane %v203, 1
    %v218 = vrot.slane %v205, 1
    %v219 = vsel %vm148, %v217, %v218
    %v220 = vrot.slane %v206, 1
    %v221 = vsel %vm148, %v215, %v220
    %v222 = vrot.slane %v207, 1
    %v223 = vsel %vm148, %v218, %v222
    %224 = vrot.lane.b32.xlu0 %v216, 126
    %v225 = vpop.permute.xlu0 %224
    %226 = vrot.lane.b32.xlu0 %v219, 126
    %v227 = vpop.permute.xlu0 %226
    %228 = vrot.lane.b32.xlu0 %v221, 126
    %v229 = vpop.permute.xlu0 %228
    %230 = vrot.lane.b32.xlu0 %v223, 126
    %v231 = vpop.permute.xlu0 %230
    %v232 = vsel %vm132, %v225, %v227
    %v233 = vsel %vm132, %v229, %v231
    %v236 = vadd.f32 %v199, %v232
    %v237 = vadd.f32 %v200, %v233
    %v238 = vld [vmem:[#allocation2] sm:$0xfc]
    %v239 = vld [vmem:[#allocation2 + $0x20] sm:$0x3]
    %v240 = vstv %s79
    %v241 = vmul.f32 %v238, %v240
    %v242 = vmul.f32 %v83, %v240
    %v243 = vmul.f32 %v239, %v240
    %vm247 = vcmask 1045504
    %v248 = vrot.slane %v241, 2
    %v249 = vrot.slane %v242, 2
    %v250 = vsel %vm247, %v248, %v249
    %v251 = vrot.slane %v243, 2
    %v252 = vsel %vm247, %v249, %v251
    %v255 = vadd.f32 %v236, %v250
    %v256 = vadd.f32 %v237, %v252
    %v257 = vld [vmem:[#allocation2] sm:$0xfc]
    %v258 = vld [vmem:[#allocation2 + $0x8] sm:$0xfc]
    %v259 = vld [vmem:[#allocation2 + $0x20] sm:$0x3]
    %v260 = vld [vmem:[#allocation2 + $0x28] sm:$0x3]
    %v261 = vstv %s80
    %v262 = vmul.f32 %v257, %v261
    %v263 = vmul.f32 %v258, %v261
    %v264 = vmul.f32 %v160, %v261
    %v265 = vmul.f32 %v161, %v261
    %v266 = vmul.f32 %v259, %v261
    %v267 = vmul.f32 %v260, %v261
    %v274 = vrot.slane %v262, 2
    %v275 = vrot.slane %v264, 2
    %v276 = vsel %vm247, %v274, %v275
    %v277 = vrot.slane %v263, 2
    %v278 = vrot.slane %v265, 2
    %v279 = vsel %vm247, %v277, %v278
    %v280 = vrot.slane %v266, 2
    %v281 = vsel %vm247, %v275, %v280
    %v282 = vrot.slane %v267, 2
    %v283 = vsel %vm247, %v278, %v282
    %284 = vrot.lane.b32.xlu0 %v276, 127
    %v285 = vpop.permute.xlu0 %284
    %286 = vrot.lane.b32.xlu0 %v279, 127
    %v287 = vpop.permute.xlu0 %286
    %288 = vrot.lane.b32.xlu0 %v281, 127
    %v289 = vpop.permute.xlu0 %288
    %290 = vrot.lane.b32.xlu0 %v283, 127
    %v291 = vpop.permute.xlu0 %290
    %v292 = vsel %vm108, %v285, %v287
    %v293 = vsel %vm108, %v289, %v291
    %v296 = vadd.f32 %v255, %v292
    %v297 = vadd.f32 %v256, %v293
    %v298 = vstv %s81
    %v299 = vmul.f32 %v257, %v298
    %v300 = vmul.f32 %v258, %v298
    %v301 = vmul.f32 %v160, %v298
    %v302 = vmul.f32 %v161, %v298
    %v303 = vmul.f32 %v259, %v298
    %v304 = vmul.f32 %v260, %v298
    %v311 = vrot.slane %v299, 2
    %v312 = vrot.slane %v301, 2
    %v313 = vsel %vm247, %v311, %v312
    %v314 = vrot.slane %v300, 2
    %v315 = vrot.slane %v302, 2
    %v316 = vsel %vm247, %v314, %v315
    %v317 = vrot.slane %v303, 2
    %v318 = vsel %vm247, %v312, %v317
    %v319 = vrot.slane %v304, 2
    %v320 = vsel %vm247, %v315, %v319
    %321 = vrot.lane.b32.xlu0 %v313, 126
    %v322 = vpop.permute.xlu0 %321
    %323 = vrot.lane.b32.xlu0 %v316, 126
    %v324 = vpop.permute.xlu0 %323
    %325 = vrot.lane.b32.xlu0 %v318, 126
    %v326 = vpop.permute.xlu0 %325
    %327 = vrot.lane.b32.xlu0 %v320, 126
    %v328 = vpop.permute.xlu0 %327
    %v329 = vsel %vm132, %v322, %v324
    %v330 = vsel %vm132, %v326, %v328
    %v333 = vadd.f32 %v296, %v329
    %v334 = vadd.f32 %v297, %v330
    %335 = vst [vmem:[#allocation10] sm:$0xff] %v333
    %336 = vst [vmem:[#allocation10 + $0x8] sm:$0xff] %v334
    // Predicated region
    $region26: #{tpu_custom_call.1} parent=1 // pred_check
      _
    $region27: #{tpu_custom_call.1} parent=1 // pred_check_branch
      %338 = sbr.rel (0) target = $region29
    $region28: #{tpu_custom_call.1} parent=1 // pred_region
      %s340 = ssub.s32 256, 256
      %341 = vsyncadd [#allocation5], %s340
      %s342 = sshll.u32 [#allocation10], 4
      %s343 = int_to_ptr.vmem [resolvable:$true] %s342
      %348 = dma.vmem_to_hbm [thread:$0]  %s343, 256, %s3, [#allocation5], 128, 128, 8
    $region29: #{tpu_custom_call.1} parent=1 // pred_fallthru
      _
    // Predicated region
    $region30: #{tpu_custom_call.1} parent=1 // pred_check
      _
    $region31: #{tpu_custom_call.1} parent=1 // pred_check_branch
      %350 = sbr.rel (0) target = $region33
    $region32: #{tpu_custom_call.1} parent=1 // pred_region
      %351 = dma.done [#allocation5], 256
    $region33: #{tpu_custom_call.1} parent=1 // pred_fallthru
      _
    %352 = vsyncpa [#allocation4], 1
    %353 = vsyncpa [#allocation8], 1
    %354 = vsyncpa [#allocation5], 1
    %355 = vsyncpa [#allocation6], 1

</llo_original>
